<compile_context>
chip_gen: v7x
topology: tpu7x:2x2x1
jax: 0.10.0
libtpu: 0.0.40
codegen_flags: <defaults>
</compile_context>

<pallas_src>
import warnings
from functools import partial

import jax
import jax.numpy as jnp
from jax import lax
from jax.experimental import pallas as pl
from jax.experimental.pallas import tpu as pltpu

# Buffer-donation "not usable" warnings are harmless (XLA falls back to a copy).
warnings.filterwarnings("ignore", message="Some donated buffers were not usable")

# ---------------- hyper-parameters (small synthetic sizes) ----------------
DIM = 128        # MoCo feature dim (module default)
K_QUEUE = 512    # queue size (small stand-in for 65536; K % batch == 0)
TK = 256         # queue-row tile; production: sweep per generation and cap so
                 # double-buffered tiles fit v7x's 64 MiB / v5e's 16 MiB scoped VMEM
LPOS_W = 128     # lane-dense slab width for the l_pos output
M_MOM = 0.999    # key-encoder momentum
TEMP = 0.07      # softmax temperature
INV_T = 1.0 / TEMP
HIDDEN = 128     # hidden width of the synthetic base_encoder MLP
EPS = 1e-12      # torch.nn.functional.normalize eps
VMEM_LIMIT = 32 * 1024 * 1024   # explicit scoped-VMEM budget (v5e default is 16 MiB)


# ---------------------------- Pallas kernels ------------------------------
def _encoders_kernel(xq_ref, xk_ref,
                     w1q_ref, b1q_ref, w2q_ref, b2q_ref,
                     w1k_ref, b1k_ref, w2k_ref, b2k_ref,
                     q_ref, k_ref, w1k_o, b1k_o, w2k_o, b2k_o):
    bf16 = jnp.bfloat16

    # ---- momentum update of the key encoder (kept in f32 so the 0.999
    # update does not accumulate bf16 rounding error across steps) ----
    w1q = w1q_ref[...]; b1q = b1q_ref[...]
    w2q = w2q_ref[...]; b2q = b2q_ref[...]
    w1k = w1k_ref[...] * M_MOM + w1q * (1.0 - M_MOM)
    b1k = b1k_ref[...] * M_MOM + b1q * (1.0 - M_MOM)
    w2k = w2k_ref[...] * M_MOM + w2q * (1.0 - M_MOM)
    b2k = b2k_ref[...] * M_MOM + b2q * (1.0 - M_MOM)
    # New key-encoder params written in place (aliased onto the inputs).
    w1k_o[...] = w1k; b1k_o[...] = b1k; w2k_o[...] = w2k; b2k_o[...] = b2k

    # ---- base_encoder(num_classes=DIM): Linear -> ReLU -> Linear, L2 norm.
    # bf16 MXU operands, f32 accumulate, f32 elementwise epilogue.
    def encode(x, w1, b1, w2, b2):
        h = jnp.dot(x.astype(bf16), w1.astype(bf16),
                    preferred_element_type=jnp.float32) + b1
        h = jnp.maximum(h, 0.0)
        f = jnp.dot(h.astype(bf16), w2.astype(bf16),
                    preferred_element_type=jnp.float32) + b2
        # torch F.normalize: x / max(||x||, eps) == x * rsqrt(max(||x||^2, eps^2))
        ss = jnp.sum(f * f, axis=-1, keepdims=True)
        return f * lax.rsqrt(jnp.maximum(ss, EPS * EPS))

    q_ref[...] = encode(xq_ref[...], w1q, b1q, w2q, b2q)
    k_ref[...] = encode(xk_ref[...], w1k, b1k, w2k, b2k)


def _logits_kernel(q_ref, k_ref, queue_ref, lpos_ref, lneg_ref):
    bf16 = jnp.bfloat16
    q = q_ref[...]

    # l_pos = einsum('nc,nc->n') / T — computed ONCE (grid step 0) into a
    # lane-dense (N, 128) slab (only column 0 is consumed downstream).
    @pl.when(pl.program_id(0) == 0)
    def _():
        lpos = jnp.sum(q * k_ref[...], axis=-1, keepdims=True) * INV_T
        lpos_ref[...] = jnp.broadcast_to(lpos, lpos_ref.shape)

    # l_neg tile = q @ queue_tile.T / T. Queue is stored row-major (K, DIM) in
    # bf16: contraction over the last dim of both operands (MXU, f32 acc).
    lneg_ref[...] = lax.dot_general(
        q.astype(bf16), queue_ref[...],
        dimension_numbers=(((1,), (1,)), ((), ())),
        preferred_element_type=jnp.float32) * INV_T


# ------------------------------ wrappers -----------------------------------
def encode_and_update(x_q, x_k, params_q, params_k):
    """Fused q/k encoder forward + in-place momentum update of params_k."""
    n = x_q.shape[0]
    w1q, b1q, w2q, b2q = params_q
    w1k, b1k, w2k, b2k = params_k
    out_shape = (
        jax.ShapeDtypeStruct((n, DIM), jnp.float32),     # q features
        jax.ShapeDtypeStruct((n, DIM), jnp.float32),     # k features (shuffled)
        jax.ShapeDtypeStruct(w1k.shape, w1k.dtype),      # new params_k (f32)
        jax.ShapeDtypeStruct(b1k.shape, b1k.dtype),
        jax.ShapeDtypeStruct(w2k.shape, w2k.dtype),
        jax.ShapeDtypeStruct(b2k.shape, b2k.dtype),
    )
    # No grid: whole arrays live in VMEM for one invocation (tiny MLP).
    # TODO(synk): at ResNet scale, tile the weights over a grid (~512-1024 rows
    # per step) and/or run the two encoder paths core-parallel on v7x.
    return pl.pallas_call(
        _encoders_kernel,
        out_shape=out_shape,
        # params_k inputs (positions 6..9) are updated in place -> the key
        # encoder weights are moved through HBM exactly once per step.
        input_output_aliases={6: 2, 7: 3, 8: 4, 9: 5},
        compiler_params=pltpu.CompilerParams(vmem_limit_bytes=VMEM_LIMIT),
    )(x_q, x_k, w1q, b1q, w2q, b2q, w1k, b1k, w2k, b2k)


def moco_logits(q, k, queue):
    n = q.shape[0]
    nblk = K_QUEUE // TK
    lpos, lneg = pl.pallas_call(
        _logits_kernel,
        out_shape=(jax.ShapeDtypeStruct((n, LPOS_W), jnp.float32),
                   jax.ShapeDtypeStruct((n, K_QUEUE), jnp.float32)),
        grid=(nblk,),
        in_specs=[pl.BlockSpec((n, DIM), lambda j: (0, 0)),    # q (VMEM-resident)
                  pl.BlockSpec((n, DIM), lambda j: (0, 0)),    # k (VMEM-resident)
                  pl.BlockSpec((TK, DIM), lambda j: (j, 0))],  # queue row tile
        out_specs=(pl.BlockSpec((n, LPOS_W), lambda j: (0, 0)),  # written once
                   pl.BlockSpec((n, TK), lambda j: (0, j))),     # lane-dense tiles
        # "arbitrary": the l_pos block stays resident across the queue axis.
        compiler_params=pltpu.CompilerParams(
            dimension_semantics=("arbitrary",),
            vmem_limit_bytes=VMEM_LIMIT),
    )(q, k, queue)
    return lpos[:, :1], lneg


# ------------------------------- MoCo model ---------------------------------
def init_moco(key, in_features):
    kw1, kw2, kq = jax.random.split(key, 3)
    w1 = jax.random.normal(kw1, (in_features, HIDDEN), jnp.float32) * 0.02
    b1 = jnp.zeros((1, HIDDEN), jnp.float32)
    w2 = jax.random.normal(kw2, (HIDDEN, DIM), jnp.float32) * 0.02
    b2 = jnp.zeros((1, DIM), jnp.float32)
    params_q = (w1, b1, w2, b2)
    params_k = tuple(jnp.array(p) for p in params_q)   # key encoder = copy of q
    # Queue stored row-major (K, DIM) in bf16 (torch stores (DIM, K) f32):
    # halves HBM read traffic in the logits kernel and makes the enqueue a
    # contiguous row write.  Rows are L2-normalized (== torch's column norm).
    queue = jax.random.normal(kq, (K_QUEUE, DIM), jnp.float32)
    queue = queue / jnp.maximum(
        jnp.sqrt(jnp.sum(queue * queue, axis=1, keepdims=True)), EPS)
    queue = queue.astype(jnp.bfloat16)
    queue_ptr = jnp.zeros((1,), jnp.int32)
    return dict(params_q=params_q, params_k=params_k,
                queue=queue, queue_ptr=queue_ptr)


@partial(jax.jit, donate_argnums=(0,))   # donate state: queue / params_k updated in place
def moco_forward(state, im_q, im_k, shuffle_key):
    n = im_q.shape[0]
    x_q = im_q.reshape(n, -1)

    # batch shuffle (world_size == 1 -> a batch permutation of im_k)
    idx_shuffle = jax.random.permutation(shuffle_key, n)
    idx_unshuffle = jnp.argsort(idx_shuffle)
    x_k = im_k[idx_shuffle].reshape(n, -1)

    # fused: momentum update (in-place params_k) + q encoder + k encoder
    q, k_shuf, w1k, b1k, w2k, b2k = encode_and_update(
        x_q, x_k, state["params_q"], state["params_k"])
    new_params_k = (w1k, b1k, w2k, b2k)
    k = lax.stop_gradient(k_shuf[idx_unshuffle])        # batch unshuffle

    # logits: lane-dense l_neg tiles + single l_pos slab from one kernel
    l_pos, l_neg = moco_logits(q, k, state["queue"])
    # TODO(synk): at production K, emit a single padded (N, 128+K) lane-dense
    # logits buffer from the kernel (-inf filler cols) instead of this concat.
    logits = jnp.concatenate([l_pos, l_neg], axis=1)
    labels = jnp.zeros((n,), dtype=jnp.int32)           # positive = column 0

    # dequeue & enqueue: contiguous row write (queue is (K, DIM) bf16, donated)
    ptr = state["queue_ptr"][0]
    queue = lax.dynamic_update_slice(
        state["queue"], k.astype(state["queue"].dtype), (ptr, jnp.int32(0)))
    queue_ptr = jnp.array([(ptr + n) % K_QUEUE], jnp.int32)

    new_state = dict(params_q=state["params_q"], params_k=new_params_k,
                     queue=queue, queue_ptr=queue_ptr)
    return logits, labels, new_state


# ------------------------------ reference -----------------------------------
def _reference(state, im_q, im_k, shuffle_key):
    # Mirrors the kernel numerics (bf16 MXU operands, f32 accumulate/epilogue).
    bf16 = jnp.bfloat16

    def enc(x, p):
        w1, b1, w2, b2 = p
        h = jnp.maximum(jnp.dot(x.astype(bf16), w1.astype(bf16),
                                preferred_element_type=jnp.float32) + b1, 0.0)
        f = jnp.dot(h.astype(bf16), w2.astype(bf16),
                    preferred_element_type=jnp.float32) + b2
        ss = jnp.sum(f * f, axis=1, keepdims=True)
        return f * lax.rsqrt(jnp.maximum(ss, EPS * EPS))

    n = im_q.shape[0]
    q = enc(im_q.reshape(n, -1), state["params_q"])
    pk = tuple(kk * M_MOM + qq * (1.0 - M_MOM)
               for qq, kk in zip(state["params_q"], state["params_k"]))
    idx = jax.random.permutation(shuffle_key, n)
    k = enc(im_k[idx].reshape(n, -1), pk)[jnp.argsort(idx)]
    l_pos = jnp.sum(q * k, axis=1, keepdims=True)
    l_neg = jnp.dot(q.astype(bf16), state["queue"].T,     # (K, DIM) bf16 queue
                    preferred_element_type=jnp.float32)
    return jnp.concatenate([l_pos, l_neg], axis=1) / TEMP


# -------------------------------- main ---------------------------------------
if __name__ == "__main__":
    key = jax.random.PRNGKey(0)
    k_init, k_q, k_k, k_shuf = jax.random.split(key, 4)

    N, C, H, W = 8, 3, 8, 8          # NCHW images (K_QUEUE % N == 0)
    im_q = jax.random.normal(k_q, (N, C, H, W), jnp.float32)
    im_k = jax.random.normal(k_k, (N, C, H, W), jnp.float32)

    state = init_moco(k_init, C * H * W)

    # Reference is computed BEFORE the forward pass because `state` buffers
    # are donated to (and updated in place by) moco_forward.
    ref_logits = _reference(state, im_q, im_k, k_shuf)
    ref_params_k = tuple(pk * M_MOM + pq * (1.0 - M_MOM)
                         for pq, pk in zip(state["params_q"], state["params_k"]))
    jax.block_until_ready((ref_logits, ref_params_k))

    logits, labels, new_state = moco_forward(state, im_q, im_k, k_shuf)
    jax.block_until_ready((logits, labels, new_state["queue"]))

    assert logits.shape == (N, 1 + K_QUEUE) and labels.shape == (N,)
    # tolerance loosened vs pure-f32: bf16 MXU operands + Mosaic-vs-XLA
    # transcendental / accumulation-order differences.
    assert jnp.allclose(logits, ref_logits, atol=2e-2, rtol=2e-2), "logits mismatch"
    for got, want in zip(new_state["params_k"], ref_params_k):
        assert jnp.allclose(got, want, atol=1e-6, rtol=1e-5), "momentum mismatch"
    assert int(new_state["queue_ptr"][0]) == N

    # TODO(synk): multi-device all_gather / broadcast of the shuffle indices
    # (torch.distributed) not modeled; single-device semantics only.
    print("KERNEL_OK")
</pallas_src>

<mosaic_0001>
module attributes {stable_mosaic.version = 11 : i64} {
  func.func @_encoders_kernel(%arg0: memref<8x192xf32, #tpu.memory_space<vmem>>, %arg1: memref<8x192xf32, #tpu.memory_space<vmem>>, %arg2: memref<192x128xf32, #tpu.memory_space<vmem>>, %arg3: memref<1x128xf32, #tpu.memory_space<vmem>>, %arg4: memref<128x128xf32, #tpu.memory_space<vmem>>, %arg5: memref<1x128xf32, #tpu.memory_space<vmem>>, %arg6: memref<192x128xf32, #tpu.memory_space<vmem>>, %arg7: memref<1x128xf32, #tpu.memory_space<vmem>>, %arg8: memref<128x128xf32, #tpu.memory_space<vmem>>, %arg9: memref<1x128xf32, #tpu.memory_space<vmem>>, %arg10: memref<8x128xf32, #tpu.memory_space<vmem>>, %arg11: memref<8x128xf32, #tpu.memory_space<vmem>>, %arg12: memref<192x128xf32, #tpu.memory_space<vmem>>, %arg13: memref<1x128xf32, #tpu.memory_space<vmem>>, %arg14: memref<128x128xf32, #tpu.memory_space<vmem>>, %arg15: memref<1x128xf32, #tpu.memory_space<vmem>>) attributes {dimension_semantics = [], scalar_prefetch = 0 : i64, scratch_operands = 0 : i64, tpu.core_type = #tpu.core_type<tc>} {
    %c0 = arith.constant 0 : index
    %c0_0 = arith.constant 0 : index
    %0 = vector.load %arg2[%c0, %c0_0] : memref<192x128xf32, #tpu.memory_space<vmem>>, vector<192x128xf32>
    %c0_1 = arith.constant 0 : index
    %c0_2 = arith.constant 0 : index
    %1 = vector.load %arg3[%c0_1, %c0_2] : memref<1x128xf32, #tpu.memory_space<vmem>>, vector<1x128xf32>
    %c0_3 = arith.constant 0 : index
    %c0_4 = arith.constant 0 : index
    %2 = vector.load %arg4[%c0_3, %c0_4] : memref<128x128xf32, #tpu.memory_space<vmem>>, vector<128x128xf32>
    %c0_5 = arith.constant 0 : index
    %c0_6 = arith.constant 0 : index
    %3 = vector.load %arg5[%c0_5, %c0_6] : memref<1x128xf32, #tpu.memory_space<vmem>>, vector<1x128xf32>
    %c0_7 = arith.constant 0 : index
    %c0_8 = arith.constant 0 : index
    %4 = vector.load %arg6[%c0_7, %c0_8] : memref<192x128xf32, #tpu.memory_space<vmem>>, vector<192x128xf32>
    %cst = arith.constant 9.990000e-01 : f32
    %5 = vector.broadcast %cst : f32 to vector<192x128xf32>
    %6 = arith.mulf %4, %5 : vector<192x128xf32>
    %cst_9 = arith.constant 1.000000e-03 : f32
    %7 = vector.broadcast %cst_9 : f32 to vector<192x128xf32>
    %8 = arith.mulf %0, %7 : vector<192x128xf32>
    %9 = arith.addf %6, %8 : vector<192x128xf32>
    %c0_10 = arith.constant 0 : index
    %c0_11 = arith.constant 0 : index
    %10 = vector.load %arg7[%c0_10, %c0_11] : memref<1x128xf32, #tpu.memory_space<vmem>>, vector<1x128xf32>
    %cst_12 = arith.constant 9.990000e-01 : f32
    %11 = vector.broadcast %cst_12 : f32 to vector<1x128xf32>
    %12 = arith.mulf %10, %11 : vector<1x128xf32>
    %cst_13 = arith.constant 1.000000e-03 : f32
    %13 = vector.broadcast %cst_13 : f32 to vector<1x128xf32>
    %14 = arith.mulf %1, %13 : vector<1x128xf32>
    %15 = arith.addf %12, %14 : vector<1x128xf32>
    %c0_14 = arith.constant 0 : index
    %c0_15 = arith.constant 0 : index
    %16 = vector.load %arg8[%c0_14, %c0_15] : memref<128x128xf32, #tpu.memory_space<vmem>>, vector<128x128xf32>
    %cst_16 = arith.constant 9.990000e-01 : f32
    %17 = vector.broadcast %cst_16 : f32 to vector<128x128xf32>
    %18 = arith.mulf %16, %17 : vector<128x128xf32>
    %cst_17 = arith.constant 1.000000e-03 : f32
    %19 = vector.broadcast %cst_17 : f32 to vector<128x128xf32>
    %20 = arith.mulf %2, %19 : vector<128x128xf32>
    %21 = arith.addf %18, %20 : vector<128x128xf32>
    %c0_18 = arith.constant 0 : index
    %c0_19 = arith.constant 0 : index
    %22 = vector.load %arg9[%c0_18, %c0_19] : memref<1x128xf32, #tpu.memory_space<vmem>>, vector<1x128xf32>
    %cst_20 = arith.constant 9.990000e-01 : f32
    %23 = vector.broadcast %cst_20 : f32 to vector<1x128xf32>
    %24 = arith.mulf %22, %23 : vector<1x128xf32>
    %cst_21 = arith.constant 1.000000e-03 : f32
    %25 = vector.broadcast %cst_21 : f32 to vector<1x128xf32>
    %26 = arith.mulf %3, %25 : vector<1x128xf32>
    %27 = arith.addf %24, %26 : vector<1x128xf32>
    %c0_22 = arith.constant 0 : index
    %c0_23 = arith.constant 0 : index
    %28 = vector.load %arg12[%c0_22, %c0_23] : memref<192x128xf32, #tpu.memory_space<vmem>>, vector<192x128xf32>
    tpu.vector_store %arg12[%c0_22, %c0_23], %9 {strides = array<i32>} : memref<192x128xf32, #tpu.memory_space<vmem>>, vector<192x128xf32>,
    %c0_24 = arith.constant 0 : index
    %c0_25 = arith.constant 0 : index
    %29 = vector.load %arg13[%c0_24, %c0_25] : memref<1x128xf32, #tpu.memory_space<vmem>>, vector<1x128xf32>
    tpu.vector_store %arg13[%c0_24, %c0_25], %15 {strides = array<i32>} : memref<1x128xf32, #tpu.memory_space<vmem>>, vector<1x128xf32>,
    %c0_26 = arith.constant 0 : index
    %c0_27 = arith.constant 0 : index
    %30 = vector.load %arg14[%c0_26, %c0_27] : memref<128x128xf32, #tpu.memory_space<vmem>>, vector<128x128xf32>
    tpu.vector_store %arg14[%c0_26, %c0_27], %21 {strides = array<i32>} : memref<128x128xf32, #tpu.memory_space<vmem>>, vector<128x128xf32>,
    %c0_28 = arith.constant 0 : index
    %c0_29 = arith.constant 0 : index
    %31 = vector.load %arg15[%c0_28, %c0_29] : memref<1x128xf32, #tpu.memory_space<vmem>>, vector<1x128xf32>
    tpu.vector_store %arg15[%c0_28, %c0_29], %27 {strides = array<i32>} : memref<1x128xf32, #tpu.memory_space<vmem>>, vector<1x128xf32>,
    %c0_30 = arith.constant 0 : index
    %c0_31 = arith.constant 0 : index
    %32 = vector.load %arg0[%c0_30, %c0_31] : memref<8x192xf32, #tpu.memory_space<vmem>>, vector<8x192xf32>
    %33 = arith.truncf %32 : vector<8x192xf32> to vector<8x192xbf16>
    %34 = arith.truncf %0 : vector<192x128xf32> to vector<192x128xbf16>
    %cst_32 = arith.constant dense<0.000000e+00> : vector<8x128xf32>
    %35 = tpu.matmul %33, %34, %cst_32 {dimension_numbers = #tpu.dot_dimension_numbers<[1], [0], [0], [1], [0, 0, 1, 1], [], []>} : vector<8x192xbf16>, vector<192x128xbf16>, vector<8x128xf32> -> vector<8x128xf32>
    %36 = vector.broadcast %1 : vector<1x128xf32> to vector<8x128xf32>
    %37 = arith.addf %35, %36 : vector<8x128xf32>
    %cst_33 = arith.constant 0.000000e+00 : f32
    %38 = vector.broadcast %cst_33 : f32 to vector<8x128xf32>
    %39 = arith.maximumf %37, %38 : vector<8x128xf32>
    %40 = arith.truncf %39 : vector<8x128xf32> to vector<8x128xbf16>
    %41 = arith.truncf %2 : vector<128x128xf32> to vector<128x128xbf16>
    %cst_34 = arith.constant dense<0.000000e+00> : vector<8x128xf32>
    %42 = tpu.matmul %40, %41, %cst_34 {dimension_numbers = #tpu.dot_dimension_numbers<[1], [0], [0], [1], [0, 0, 1, 1], [], []>} : vector<8x128xbf16>, vector<128x128xbf16>, vector<8x128xf32> -> vector<8x128xf32>
    %43 = vector.broadcast %3 : vector<1x128xf32> to vector<8x128xf32>
    %44 = arith.addf %42, %43 : vector<8x128xf32>
    %45 = arith.mulf %44, %44 : vector<8x128xf32>
    %cst_35 = arith.constant dense<0.000000e+00> : vector<8xf32>
    %46 = vector.multi_reduction <add>, %45, %cst_35 [1] : vector<8x128xf32> to vector<8xf32>
    %47 = vector.shape_cast %46 : vector<8xf32> to vector<8x1xf32>
    %cst_36 = arith.constant 1.000000e-24 : f32
    %48 = vector.broadcast %cst_36 : f32 to vector<8x1xf32>
    %49 = arith.maximumf %47, %48 : vector<8x1xf32>
    %50 = math.rsqrt %49 : vector<8x1xf32>
    %51 = vector.broadcast %50 : vector<8x1xf32> to vector<8x128xf32>
    %52 = arith.mulf %44, %51 : vector<8x128xf32>
    %c0_37 = arith.constant 0 : index
    %c0_38 = arith.constant 0 : index
    %53 = vector.load %arg10[%c0_37, %c0_38] : memref<8x128xf32, #tpu.memory_space<vmem>>, vector<8x128xf32>
    tpu.vector_store %arg10[%c0_37, %c0_38], %52 {strides = array<i32>} : memref<8x128xf32, #tpu.memory_space<vmem>>, vector<8x128xf32>,
    %c0_39 = arith.constant 0 : index
    %c0_40 = arith.constant 0 : index
    %54 = vector.load %arg1[%c0_39, %c0_40] : memref<8x192xf32, #tpu.memory_space<vmem>>, vector<8x192xf32>
    %55 = arith.truncf %54 : vector<8x192xf32> to vector<8x192xbf16>
    %56 = arith.truncf %9 : vector<192x128xf32> to vector<192x128xbf16>
    %cst_41 = arith.constant dense<0.000000e+00> : vector<8x128xf32>
    %57 = tpu.matmul %55, %56, %cst_41 {dimension_numbers = #tpu.dot_dimension_numbers<[1], [0], [0], [1], [0, 0, 1, 1], [], []>} : vector<8x192xbf16>, vector<192x128xbf16>, vector<8x128xf32> -> vector<8x128xf32>
    %58 = vector.broadcast %15 : vector<1x128xf32> to vector<8x128xf32>
    %59 = arith.addf %57, %58 : vector<8x128xf32>
    %cst_42 = arith.constant 0.000000e+00 : f32
    %60 = vector.broadcast %cst_42 : f32 to vector<8x128xf32>
    %61 = arith.maximumf %59, %60 : vector<8x128xf32>
    %62 = arith.truncf %61 : vector<8x128xf32> to vector<8x128xbf16>
    %63 = arith.truncf %21 : vector<128x128xf32> to vector<128x128xbf16>
    %cst_43 = arith.constant dense<0.000000e+00> : vector<8x128xf32>
    %64 = tpu.matmul %62, %63, %cst_43 {dimension_numbers = #tpu.dot_dimension_numbers<[1], [0], [0], [1], [0, 0, 1, 1], [], []>} : vector<8x128xbf16>, vector<128x128xbf16>, vector<8x128xf32> -> vector<8x128xf32>
    %65 = vector.broadcast %27 : vector<1x128xf32> to vector<8x128xf32>
    %66 = arith.addf %64, %65 : vector<8x128xf32>
    %67 = arith.mulf %66, %66 : vector<8x128xf32>
    %cst_44 = arith.constant dense<0.000000e+00> : vector<8xf32>
    %68 = vector.multi_reduction <add>, %67, %cst_44 [1] : vector<8x128xf32> to vector<8xf32>
    %69 = vector.shape_cast %68 : vector<8xf32> to vector<8x1xf32>
    %cst_45 = arith.constant 1.000000e-24 : f32
    %70 = vector.broadcast %cst_45 : f32 to vector<8x1xf32>
    %71 = arith.maximumf %69, %70 : vector<8x1xf32>
    %72 = math.rsqrt %71 : vector<8x1xf32>
    %73 = vector.broadcast %72 : vector<8x1xf32> to vector<8x128xf32>
    %74 = arith.mulf %66, %73 : vector<8x128xf32>
    %c0_46 = arith.constant 0 : index
    %c0_47 = arith.constant 0 : index
    %75 = vector.load %arg11[%c0_46, %c0_47] : memref<8x128xf32, #tpu.memory_space<vmem>>, vector<8x128xf32>
    tpu.vector_store %arg11[%c0_46, %c0_47], %74 {strides = array<i32>} : memref<8x128xf32, #tpu.memory_space<vmem>>, vector<8x128xf32>,
    return
  }
}

module attributes {stable_mosaic.version = 11 : i64} {
  func.func @_logits_kernel(%arg0: i32, %arg1: memref<8x128xf32, #tpu.memory_space<vmem>>, %arg2: memref<8x128xf32, #tpu.memory_space<vmem>>, %arg3: memref<256x128xbf16, #tpu.memory_space<vmem>>, %arg4: memref<8x128xf32, #tpu.memory_space<vmem>>, %arg5: memref<8x256xf32, #tpu.memory_space<vmem>>) attributes {dimension_semantics = [#tpu.dimension_semantics<arbitrary>], iteration_bounds = array<i64: 2>, scalar_prefetch = 0 : i64, scratch_operands = 0 : i64, tpu.core_type = #tpu.core_type<tc>, window_params = [{pipeline_mode = #tpu.pipeline_mode<synchronous>, transform_indices = @transform_0, window_bounds = array<i64: 8, 128>}, {pipeline_mode = #tpu.pipeline_mode<synchronous>, transform_indices = @transform_1, window_bounds = array<i64: 8, 128>}, {transform_indices = @transform_2, window_bounds = array<i64: 256, 128>}, {pipeline_mode = #tpu.pipeline_mode<synchronous>, transform_indices = @transform_3, window_bounds = array<i64: 8, 128>}, {transform_indices = @transform_4, window_bounds = array<i64: 8, 256>}]} {
    %c0 = arith.constant 0 : index
    %c0_0 = arith.constant 0 : index
    %0 = vector.load %arg1[%c0, %c0_0] : memref<8x128xf32, #tpu.memory_space<vmem>>, vector<8x128xf32>
    %c0_i32 = arith.constant 0 : i32
    %1 = arith.cmpi eq, %arg0, %c0_i32 : i32
    %2 = arith.extui %1 : i1 to i32
    %c0_i32_1 = arith.constant 0 : i32
    %3 = arith.cmpi ne, %2, %c0_i32_1 : i32
    scf.if %3 {
      %c0_7 = arith.constant 0 : index
      %c0_8 = arith.constant 0 : index
      %10 = vector.load %arg2[%c0_7, %c0_8] : memref<8x128xf32, #tpu.memory_space<vmem>>, vector<8x128xf32>
      %11 = arith.mulf %0, %10 : vector<8x128xf32>
      %cst_9 = arith.constant dense<0.000000e+00> : vector<8xf32>
      %12 = vector.multi_reduction <add>, %11, %cst_9 [1] : vector<8x128xf32> to vector<8xf32>
      %13 = vector.shape_cast %12 : vector<8xf32> to vector<8x1xf32>
      %cst_10 = arith.constant 14.2857141 : f32
      %14 = vector.broadcast %cst_10 : f32 to vector<8x1xf32>
      %15 = arith.mulf %13, %14 : vector<8x1xf32>
      %16 = vector.shape_cast %15 : vector<8x1xf32> to vector<8x1xf32>
      %17 = vector.broadcast %16 : vector<8x1xf32> to vector<8x128xf32>
      %c0_11 = arith.constant 0 : index
      %c0_12 = arith.constant 0 : index
      %18 = vector.load %arg4[%c0_11, %c0_12] : memref<8x128xf32, #tpu.memory_space<vmem>>, vector<8x128xf32>
      tpu.vector_store %arg4[%c0_11, %c0_12], %17 {strides = array<i32>} : memref<8x128xf32, #tpu.memory_space<vmem>>, vector<8x128xf32>,
    } else {
    }
    %4 = arith.truncf %0 : vector<8x128xf32> to vector<8x128xbf16>
    %c0_2 = arith.constant 0 : index
    %c0_3 = arith.constant 0 : index
    %5 = vector.load %arg3[%c0_2, %c0_3] : memref<256x128xbf16, #tpu.memory_space<vmem>>, vector<256x128xbf16>
    %cst = arith.constant dense<0.000000e+00> : vector<8x256xf32>
    %6 = tpu.matmul %4, %5, %cst {dimension_numbers = #tpu.dot_dimension_numbers<[1], [1], [0], [0], [0, 0, 1, 0], [], []>} : vector<8x128xbf16>, vector<256x128xbf16>, vector<8x256xf32> -> vector<8x256xf32>
    %cst_4 = arith.constant 14.2857141 : f32
    %7 = vector.broadcast %cst_4 : f32 to vector<8x256xf32>
    %8 = arith.mulf %6, %7 : vector<8x256xf32>
    %c0_5 = arith.constant 0 : index
    %c0_6 = arith.constant 0 : index
    %9 = vector.load %arg5[%c0_5, %c0_6] : memref<8x256xf32, #tpu.memory_space<vmem>>, vector<8x256xf32>
    tpu.vector_store %arg5[%c0_5, %c0_6], %8 {strides = array<i32>} : memref<8x256xf32, #tpu.memory_space<vmem>>, vector<8x256xf32>,
    return
  }
  func.func @transform_0(%arg0: i32) -> (i32, i32) {
    %c0_i32 = arith.constant 0 : i32
    %c0_i32_0 = arith.constant 0 : i32
    %c0_i32_1 = arith.constant 0 : i32
    return %c0_i32, %c0_i32_0 : i32, i32
  }
  func.func @transform_1(%arg0: i32) -> (i32, i32) {
    %c0_i32 = arith.constant 0 : i32
    %c0_i32_0 = arith.constant 0 : i32
    %c0_i32_1 = arith.constant 0 : i32
    return %c0_i32, %c0_i32_0 : i32, i32
  }
  func.func @transform_2(%arg0: i32) -> (i32, i32) {
    %c0_i32 = arith.constant 0 : i32
    %c0_i32_0 = arith.constant 0 : i32
    return %arg0, %c0_i32 : i32, i32
  }
  func.func @transform_3(%arg0: i32) -> (i32, i32) {
    %c0_i32 = arith.constant 0 : i32
    %c0_i32_0 = arith.constant 0 : i32
    %c0_i32_1 = arith.constant 0 : i32
    return %c0_i32, %c0_i32_0 : i32, i32
  }
  func.func @transform_4(%arg0: i32) -> (i32, i32) {
    %c0_i32 = arith.constant 0 : i32
    %c0_i32_0 = arith.constant 0 : i32
    return %c0_i32, %arg0 : i32, i32
  }
}

</mosaic_0001>

<llo_original>
// kernel: moco_forward.3
$region0: #{moco_forward.3}
  #allocation0 [shape = 'u32[]', space=smem, size = 0x4, offset = 0x4, fixed_abs, tag = 'smem constant byte address 0x4 - core index']
  #allocation1 [shape = 'u32[144,128]{1,0:T(1,128)}', space=vmem, size = 0x12000, scoped, tag = 'internal scratch']
  %s0 = inlined_call_operand.vmem [shape: f32[8,128], index: 0, kind: input, shape index: {}]
  %s1 = inlined_call_operand.vmem [shape: f32[8,128], index: 1, kind: input, shape index: {}]
  %s2 = inlined_call_operand.vmem [shape: bf16[512,128], index: 2, kind: input, shape index: {}]
  %s3 = inlined_call_operand.vmem [shape: f32[8,128], index: 3, kind: output, shape index: {0}]
  %s4 = inlined_call_operand.vmem [shape: f32[8,512], index: 4, kind: output, shape index: {1}]
  %5 = xla_tuple %s3, %s4
  %s6 = sld [smem:[#allocation0]]
  $region57: #{moco_forward.3} parent=0
    _
  %s8 = ssub.s32 1, %s6
  %s9 = scalar_select 0, %s8, %s6
  loop: start=0, step=1, limit=4
  $region2: #{moco_forward.3} parent=0 // loop_pre_header
    _
  $region3: #{moco_forward.3} parent=0 // loop_header
    %s11 = sphi 0, %s15
    %p12 = scmp.ge.s32.totalorder %s11, 4
    %s19 = sphi 0, %s19
    %s21 = sphi 0, %s19
    %s22 = sphi 0, %s21
    %s36 = sphi 0, %s22
    %s40 = sphi 0, %s40
    %s42 = sphi 0, %s40
    %s43 = sphi 0, %s42
    %s57 = sphi 0, %s43
    %s63 = sphi 0, %s65
    %s66 = sphi 0, %s63
    %s67 = sphi 0, %s66
    %s83 = sphi 0, %s67
    %s87 = sphi 0, %s87
    %s89 = sphi 0, %s87
    %s90 = sphi 0, %s89
    %s104 = sphi 0, %s90
    %s110 = sphi 0, %s112
    %s113 = sphi 0, %s110
    %s114 = sphi 0, %s113
    %s130 = sphi 0, %s114
  $region4: #{moco_forward.3} parent=0 // loop_header_branch
    %14 = sbr.rel (%p12) target = $region8
  $region5: #{moco_forward.3} parent=0 // loop_body
    %s16 = ssub.s32 %s11, 1
    %s17 = ssub.s32 %s11, 2
    %s18 = sadd.s32 %s11, 1
    %s20 = sadd.s32 %s19, 1
    %p23 = scmp.eq.s32.totalorder %s11, 1
    %p24 = scmp.ne.s32.totalorder %s19, %s21
    %p25 = scmp.eq.s32.totalorder %s11, 0
    %p26 = por %p24, %p25
    %p27 = scmp.ne.s32.totalorder %s19, %s21
    %p28 = scmp.eq.s32.totalorder %s16, 1
    %p29 = por %p27, %p28
    %p30 = scmp.ne.s32.totalorder %s21, %s22
    %p31 = scmp.eq.s32.totalorder %s16, 0
    %p32 = por %p30, %p31
    %p33 = scmp.ne.s32.totalorder %s21, %s22
    %p34 = scmp.eq.s32.totalorder %s17, 1
    %p35 = por %p33, %p34
    %p37 = scmp.ne.s32.totalorder %s22, %s36
    %p38 = scmp.eq.s32.totalorder %s17, 0
    %p39 = por %p37, %p38
    %s41 = sadd.s32 %s40, 1
    %p44 = scmp.eq.s32.totalorder %s11, 1
    %p45 = scmp.ne.s32.totalorder %s40, %s42
    %p46 = scmp.eq.s32.totalorder %s11, 0
    %p47 = por %p45, %p46
    %p48 = scmp.ne.s32.totalorder %s40, %s42
    %p49 = scmp.eq.s32.totalorder %s16, 1
    %p50 = por %p48, %p49
    %p51 = scmp.ne.s32.totalorder %s42, %s43
    %p52 = scmp.eq.s32.totalorder %s16, 0
    %p53 = por %p51, %p52
    %p54 = scmp.ne.s32.totalorder %s42, %s43
    %p55 = scmp.eq.s32.totalorder %s17, 1
    %p56 = por %p54, %p55
    %p58 = scmp.ne.s32.totalorder %s43, %s57
    %p59 = scmp.eq.s32.totalorder %s17, 0
    %p60 = por %p58, %p59
    %s61 = ssub.s32 %s11, %s18
    %p62 = scmp.eq.s32.totalorder %s61, 0
    %s64 = sadd.s32 %s63, 1
    %s65 = scalar_select %p62, %s63, %s64
    %p68 = pneg %p62
    %p69 = scmp.eq.s32.totalorder %s11, 1
    %p70 = por %p68, %p69
    %p71 = scmp.ne.s32.totalorder %s63, %s66
    %p72 = scmp.eq.s32.totalorder %s11, 0
    %p73 = por %p71, %p72
    %p74 = scmp.ne.s32.totalorder %s63, %s66
    %p75 = scmp.eq.s32.totalorder %s16, 1
    %p76 = por %p74, %p75
    %p77 = scmp.ne.s32.totalorder %s66, %s67
    %p78 = scmp.eq.s32.totalorder %s16, 0
    %p79 = por %p77, %p78
    %p80 = scmp.ne.s32.totalorder %s66, %s67
    %p81 = scmp.eq.s32.totalorder %s17, 1
    %p82 = por %p80, %p81
    %p84 = scmp.ne.s32.totalorder %s67, %s83
    %p85 = scmp.eq.s32.totalorder %s17, 0
    %p86 = por %p84, %p85
    %s88 = sadd.s32 %s87, 1
    %p91 = scmp.eq.s32.totalorder %s11, 1
    %p92 = scmp.ne.s32.totalorder %s87, %s89
    %p93 = scmp.eq.s32.totalorder %s11, 0
    %p94 = por %p92, %p93
    %p95 = scmp.ne.s32.totalorder %s87, %s89
    %p96 = scmp.eq.s32.totalorder %s16, 1
    %p97 = por %p95, %p96
    %p98 = scmp.ne.s32.totalorder %s89, %s90
    %p99 = scmp.eq.s32.totalorder %s16, 0
    %p100 = por %p98, %p99
    %p101 = scmp.ne.s32.totalorder %s89, %s90
    %p102 = scmp.eq.s32.totalorder %s17, 1
    %p103 = por %p101, %p102
    %p105 = scmp.ne.s32.totalorder %s90, %s104
    %p106 = scmp.eq.s32.totalorder %s17, 0
    %p107 = por %p105, %p106
    %s108 = ssub.s32 %s11, %s18
    %p109 = scmp.eq.s32.totalorder %s108, 0
    %s111 = sadd.s32 %s110, 1
    %s112 = scalar_select %p109, %s110, %s111
    %p115 = pneg %p109
    %p116 = scmp.eq.s32.totalorder %s11, 1
    %p117 = por %p115, %p116
    %p118 = scmp.ne.s32.totalorder %s110, %s113
    %p119 = scmp.eq.s32.totalorder %s11, 0
    %p120 = por %p118, %p119
    %p121 = scmp.ne.s32.totalorder %s110, %s113
    %p122 = scmp.eq.s32.totalorder %s16, 1
    %p123 = por %p121, %p122
    %p124 = scmp.ne.s32.totalorder %s113, %s114
    %p125 = scmp.eq.s32.totalorder %s16, 0
    %p126 = por %p124, %p125
    %p127 = scmp.ne.s32.totalorder %s113, %s114
    %p128 = scmp.eq.s32.totalorder %s17, 1
    %p129 = por %p127, %p128
    %p131 = scmp.ne.s32.totalorder %s114, %s130
    %p132 = scmp.eq.s32.totalorder %s17, 0
    %p133 = por %p131, %p132
    %p134 = scmp.le.s32.totalorder 1, %s11
    %p135 = scmp.lt.s32.totalorder %s11, 3
    %p136 = pnand %p134, %p135
    %p137 = pneg %p136
    // Predicated region
    $region9: #{moco_forward.3} parent=5 // pred_check
      _
    $region10: #{moco_forward.3} parent=5 // pred_check_branch
      %139 = sbr.rel (%p136) target = $region12
    $region11: #{moco_forward.3} parent=5 // pred_region
      %s140 = ssub.s32 %s11, 1
      // Predicated region
      $region13: #{moco_forward.3} parent=11 // pred_check
        %p141 = pneg %p32
      $region14: #{moco_forward.3} parent=11 // pred_check_branch
        %143 = sbr.rel (%p141) target = $region16
      $region15: #{moco_forward.3} parent=11 // pred_region
        _
      $region16: #{moco_forward.3} parent=11 // pred_fallthru
        _
      // Predicated region
      $region17: #{moco_forward.3} parent=11 // pred_check
        %p144 = pneg %p53
      $region18: #{moco_forward.3} parent=11 // pred_check_branch
        %146 = sbr.rel (%p144) target = $region20
      $region19: #{moco_forward.3} parent=11 // pred_region
        _
      $region20: #{moco_forward.3} parent=11 // pred_fallthru
        _
    $region12: #{moco_forward.3} parent=5 // pred_fallthru
      _
    %p147 = scmp.lt.s32.totalorder %s11, 2
    // Predicated region
    $region21: #{moco_forward.3} parent=5 // pred_check
      %p148 = pneg %p147
    $region22: #{moco_forward.3} parent=5 // pred_check_branch
      %150 = sbr.rel (%p148) target = $region24
    $region23: #{moco_forward.3} parent=5 // pred_region
      // Predicated region
      $region25: #{moco_forward.3} parent=23 // pred_check
        %p151 = pneg %p73
      $region26: #{moco_forward.3} parent=23 // pred_check_branch
        %153 = sbr.rel (%p151) target = $region28
      $region27: #{moco_forward.3} parent=23 // pred_region
        %s154 = smul.u32 32, %s11
        %p155 = scmp.lt.s32.totalorder %s154, 63
        %s156 = scalar_select %p155, %s154, 63
        %s157 = smul.addr %s156, 4
        %s158 = scalar_lea.vmem %s2, %s157
        %s159 = smul.u32 32, %s11
      $region28: #{moco_forward.3} parent=23 // pred_fallthru
        _
    $region24: #{moco_forward.3} parent=5 // pred_fallthru
      _
    %p160 = scmp.le.s32.totalorder 1, %s11
    %p161 = scmp.lt.s32.totalorder %s11, 3
    %p162 = pnand %p160, %p161
    %p163 = pneg %p162
    // Predicated region
    $region29: #{moco_forward.3} parent=5 // pred_check
      _
    $region30: #{moco_forward.3} parent=5 // pred_check_branch
      %165 = sbr.rel (%p162) target = $region32
    $region31: #{moco_forward.3} parent=5 // pred_region
      %s166 = ssub.s32 %s11, 1
      %p167 = pneg %p32
      %p168 = pneg %p29
      %p169 = pneg %p53
      %p170 = pneg %p50
      %s171 = smul.u32 32, %s16
      %p172 = scmp.lt.s32.totalorder %s171, 63
      %s173 = scalar_select %p172, %s171, 63
      %s174 = smul.addr %s173, 4
      %s175 = scalar_lea.vmem %s2, %s174
      %p176 = pneg %p79
      %p177 = pneg %p76
      %p178 = pneg %p100
      %p179 = pneg %p97
      %p180 = pneg %p126
      %p181 = pneg %p123
      %s182 = smul.u32 2, %s16
      %p183 = scmp.lt.s32.totalorder %s182, 3
      %s184 = scalar_select %p183, %s182, 3
      %s185 = smul.addr %s184, 8
      %s186 = scalar_lea.vmem %s4, %s185
      %s187 = smul.u32 32, %s16
      %p188 = scmp.lt.s32.totalorder %s187, 63
      %s189 = scalar_select %p188, %s187, 63
      %s190 = smul.addr %s189, 4
      %s191 = scalar_lea.vmem %s2, %s190
      %s192 = smul.u32 32, %s16
      %s193 = smul.u32 2, %s16
      %p194 = scmp.lt.s32.totalorder %s193, 3
      %s195 = scalar_select %p194, %s193, 3
      %s196 = smul.addr %s195, 8
      %s197 = scalar_lea.vmem %s4, %s196
      %s198 = smul.u32 2, %s16
      %v200 = vld [vmem:[%s0] sm:$0xff]
      %p201 = scmp.eq.s32.totalorder %s16, 0
      // Predicated region
      $region33: #{moco_forward.3} parent=31 // pred_check
        %p202 = pneg %p201
      $region34: #{moco_forward.3} parent=31 // pred_check_branch
        %204 = sbr.rel (%p202) target = $region36
      $region35: #{moco_forward.3} parent=31 // pred_region
        %v205 = vld [vmem:[%s1] sm:$0xff]
        %v206 = vmul.f32 %v200, %v205
        %207 = vadd.xlane.f32.xlu0 %v206
        %v208 = vpop.xlane.xlu0 %207
        %v209 = vmul.f32 %v208, 14.285714
        %210 = vst [vmem:[%s3] sm:$0xff] %v209
      $region36: #{moco_forward.3} parent=31 // pred_fallthru
        _
      %v211 = vpack.c.bf16 %v200, %v200
      %v212 = vld [vmem:[%s191] sm:$0xf]
      %v213 = vld [vmem:[%s191 + $0x4] sm:$0xf]
      %v214 = vld [vmem:[%s191 + $0x8] sm:$0xf]
      %v215 = vld [vmem:[%s191 + $0xc] sm:$0xf]
      %v216 = vld [vmem:[%s191 + $0x10] sm:$0xf]
      %v217 = vld [vmem:[%s191 + $0x14] sm:$0xf]
      %v218 = vld [vmem:[%s191 + $0x18] sm:$0xf]
      %v219 = vld [vmem:[%s191 + $0x1c] sm:$0xf]
      %v220 = vld [vmem:[%s191 + $0x20] sm:$0xf]
      %v221 = vld [vmem:[%s191 + $0x24] sm:$0xf]
      %v222 = vld [vmem:[%s191 + $0x28] sm:$0xf]
      %v223 = vld [vmem:[%s191 + $0x2c] sm:$0xf]
      %v224 = vld [vmem:[%s191 + $0x30] sm:$0xf]
      %v225 = vld [vmem:[%s191 + $0x34] sm:$0xf]
      %v226 = vld [vmem:[%s191 + $0x38] sm:$0xf]
      %v227 = vld [vmem:[%s191 + $0x3c] sm:$0xf]
      %v228 = vld [vmem:[%s191 + $0x40] sm:$0xf]
      %v229 = vld [vmem:[%s191 + $0x44] sm:$0xf]
      %v230 = vld [vmem:[%s191 + $0x48] sm:$0xf]
      %v231 = vld [vmem:[%s191 + $0x4c] sm:$0xf]
      %v232 = vld [vmem:[%s191 + $0x50] sm:$0xf]
      %v233 = vld [vmem:[%s191 + $0x54] sm:$0xf]
      %v234 = vld [vmem:[%s191 + $0x58] sm:$0xf]
      %v235 = vld [vmem:[%s191 + $0x5c] sm:$0xf]
      %v236 = vld [vmem:[%s191 + $0x60] sm:$0xf]
      %v237 = vld [vmem:[%s191 + $0x64] sm:$0xf]
      %v238 = vld [vmem:[%s191 + $0x68] sm:$0xf]
      %v239 = vld [vmem:[%s191 + $0x6c] sm:$0xf]
      %v240 = vld [vmem:[%s191 + $0x70] sm:$0xf]
      %v241 = vld [vmem:[%s191 + $0x74] sm:$0xf]
      %v242 = vld [vmem:[%s191 + $0x78] sm:$0xf]
      %v243 = vld [vmem:[%s191 + $0x7c] sm:$0xf]
      %v276 = vunpack.c.l.b16 %v212
      %v277 = vunpack.c.l.b16 %v213
      %v278 = vunpack.c.l.b16 %v214
      %v279 = vunpack.c.l.b16 %v215
      %v280 = vunpack.c.l.b16 %v216
      %v281 = vunpack.c.l.b16 %v217
      %v282 = vunpack.c.l.b16 %v218
      %v283 = vunpack.c.l.b16 %v219
      %v284 = vunpack.c.l.b16 %v220
      %v285 = vunpack.c.l.b16 %v221
      %v286 = vunpack.c.l.b16 %v222
      %v287 = vunpack.c.l.b16 %v223
      %v288 = vunpack.c.l.b16 %v224
      %v289 = vunpack.c.l.b16 %v225
      %v290 = vunpack.c.l.b16 %v226
      %v291 = vunpack.c.l.b16 %v227
      %v292 = vunpack.c.l.b16 %v228
      %v293 = vunpack.c.l.b16 %v229
      %v294 = vunpack.c.l.b16 %v230
      %v295 = vunpack.c.l.b16 %v231
      %v296 = vunpack.c.l.b16 %v232
      %v297 = vunpack.c.l.b16 %v233
      %v298 = vunpack.c.l.b16 %v234
      %v299 = vunpack.c.l.b16 %v235
      %v300 = vunpack.c.l.b16 %v236
      %v301 = vunpack.c.l.b16 %v237
      %v302 = vunpack.c.l.b16 %v238
      %v303 = vunpack.c.l.b16 %v239
      %v304 = vunpack.c.l.b16 %v240
      %v305 = vunpack.c.l.b16 %v241
      %v306 = vunpack.c.l.b16 %v242
      %v307 = vunpack.c.l.b16 %v243
      %v308 = vpack.c.b16 %v277, %v276
      %v309 = vpack.c.b16 %v279, %v278
      %v310 = vpack.c.b16 %v281, %v280
      %v311 = vpack.c.b16 %v283, %v282
      %v312 = vpack.c.b16 %v285, %v284
      %v313 = vpack.c.b16 %v287, %v286
      %v314 = vpack.c.b16 %v289, %v288
      %v315 = vpack.c.b16 %v291, %v290
      %v316 = vpack.c.b16 %v293, %v292
      %v317 = vpack.c.b16 %v295, %v294
      %v318 = vpack.c.b16 %v297, %v296
      %v319 = vpack.c.b16 %v299, %v298
      %v320 = vpack.c.b16 %v301, %v300
      %v321 = vpack.c.b16 %v303, %v302
      %v322 = vpack.c.b16 %v305, %v304
      %v323 = vpack.c.b16 %v307, %v306
      %340 = vmatprep.subr.bf16.mxu0 0
      %341 = vmatpush1.bf16.xpose.msra.mxu0 %v308
      %342 = vmatprep.subr.bf16.mxu0 0
      %343 = vmatpush1.bf16.xpose.msra.mxu0 %v309
      %344 = vmatprep.subr.bf16.mxu0 0
      %345 = vmatpush1.bf16.xpose.msra.mxu0 %v310
      %346 = vmatprep.subr.bf16.mxu0 0
      %347 = vmatpush1.bf16.xpose.msra.mxu0 %v311
      %348 = vmatprep.subr.bf16.mxu0 0
      %349 = vmatpush1.bf16.xpose.msra.mxu0 %v312
      %350 = vmatprep.subr.bf16.mxu0 0
      %351 = vmatpush1.bf16.xpose.msra.mxu0 %v313
      %352 = vmatprep.subr.bf16.mxu0 0
      %353 = vmatpush1.bf16.xpose.msra.mxu0 %v314
      %354 = vmatprep.subr.bf16.mxu0 0
      %355 = vmatpush1.bf16.xpose.msra.mxu0 %v315
      %356 = vmatprep.subr.bf16.mxu0 0
      %357 = vmatpush1.bf16.xpose.msra.mxu0 %v316
      %358 = vmatprep.subr.bf16.mxu0 0
      %359 = vmatpush1.bf16.xpose.msra.mxu0 %v317
      %360 = vmatprep.subr.bf16.mxu0 0
      %361 = vmatpush1.bf16.xpose.msra.mxu0 %v318
      %362 = vmatprep.subr.bf16.mxu0 0
      %363 = vmatpush1.bf16.xpose.msra.mxu0 %v319
      %364 = vmatprep.subr.bf16.mxu0 0
      %365 = vmatpush1.bf16.xpose.msra.mxu0 %v320
      %366 = vmatprep.subr.bf16.mxu0 0
      %367 = vmatpush1.bf16.xpose.msra.mxu0 %v321
      %368 = vmatprep.subr.bf16.mxu0 0
      %369 = vmatpush1.bf16.xpose.msra.mxu0 %v322
      %370 = vmatprep.subr.bf16.mxu0 0
      %371 = vmatpush1.bf16.xpose.msra.mxu0 %v323
      %372 = vmatprep.mubr.bf16.mxu0 0
      %373 = vmatmul.mubr.bf16.gmra.mrb[0].mxu0 %v211
      %v374 = vpop.f32.mrb[0].mxu0
      %v375 = vadd.f32 0.0, %v374
      %v376 = vpop.f32.mrb[0].mxu0
      %v377 = vadd.f32 0.0, %v376
      %v378 = vpop.f32.mrb[0].mxu0
      %v379 = vpop.f32.mrb[0].mxu0
      %380 = vdwg.mxu0
      %v381 = vmul.f32 %v375, 14.285714
      %v382 = vmul.f32 %v377, 14.285714
      %383 = vst [vmem:[%s197] sm:$0xff] %v381
      %384 = vst [vmem:[%s197 + $0x8] sm:$0xff] %v382
      %s385 = smul.u32 2, %s16
      %p386 = scmp.lt.s32.totalorder %s385, 3
      %s387 = scalar_select %p386, %s385, 3
      %s388 = smul.addr %s387, 8
      %s389 = scalar_lea.vmem %s4, %s388
      // Predicated region
      $region37: #{moco_forward.3} parent=31 // pred_check
        %p390 = pneg %p97
      $region38: #{moco_forward.3} parent=31 // pred_check_branch
        %392 = sbr.rel (%p390) target = $region40
      $region39: #{moco_forward.3} parent=31 // pred_region
        _
      $region40: #{moco_forward.3} parent=31 // pred_fallthru
        _
      // Predicated region
      $region41: #{moco_forward.3} parent=31 // pred_check
        %p393 = pneg %p123
      $region42: #{moco_forward.3} parent=31 // pred_check_branch
        %395 = sbr.rel (%p393) target = $region44
      $region43: #{moco_forward.3} parent=31 // pred_region
        %s396 = smul.u32 2, %s16
      $region44: #{moco_forward.3} parent=31 // pred_fallthru
        _
      // Predicated region
      $region45: #{moco_forward.3} parent=31 // pred_check
        %p397 = pneg %p97
      $region46: #{moco_forward.3} parent=31 // pred_check_branch
        %399 = sbr.rel (%p397) target = $region48
      $region47: #{moco_forward.3} parent=31 // pred_region
        _
      $region48: #{moco_forward.3} parent=31 // pred_fallthru
        _
    $region32: #{moco_forward.3} parent=5 // pred_fallthru
      _
    %p400 = scmp.le.s32.totalorder 2, %s11
    // Predicated region
    $region49: #{moco_forward.3} parent=5 // pred_check
      %p401 = pneg %p400
    $region50: #{moco_forward.3} parent=5 // pred_check_branch
      %403 = sbr.rel (%p401) target = $region52
    $region51: #{moco_forward.3} parent=5 // pred_region
      %s404 = ssub.s32 %s11, 2
      // Predicated region
      $region53: #{moco_forward.3} parent=51 // pred_check
        %p405 = pneg %p129
      $region54: #{moco_forward.3} parent=51 // pred_check_branch
        %407 = sbr.rel (%p405) target = $region56
      $region55: #{moco_forward.3} parent=51 // pred_region
        %s408 = smul.u32 2, %s17
        %p409 = scmp.lt.s32.totalorder %s408, 3
        %s410 = scalar_select %p409, %s408, 3
        %s411 = smul.addr %s410, 8
        %s412 = scalar_lea.vmem %s4, %s411
      $region56: #{moco_forward.3} parent=51 // pred_fallthru
        _
    $region52: #{moco_forward.3} parent=5 // pred_fallthru
      _
  $region6: #{moco_forward.3} parent=0 // loop_footer
    %s15 = sadd.s32 1, %s11
  $region7: #{moco_forward.3} parent=0 // loop_footer_branch
    %10 = sbr.rel target = $region3
  $region8: #{moco_forward.3} parent=0 // loop_exit
    _

// kernel: moco_forward.2
$region0: #{moco_forward.2}
  #allocation0 [shape = 'u32[]', space=smem, size = 0x4, offset = 0x4, fixed_abs, tag = 'smem constant byte address 0x4 - core index']
  #allocation1 [shape = 'u32[144,128]{1,0:T(1,128)}', space=vmem, size = 0x12000, scoped, tag = 'internal scratch']
  %s0 = inlined_call_operand.vmem [shape: f32[8,192], index: 0, kind: input, shape index: {}]
  %s1 = inlined_call_operand.vmem [shape: f32[8,192], index: 1, kind: input, shape index: {}]
  %s2 = inlined_call_operand.vmem [shape: f32[192,128], index: 2, kind: input, shape index: {}]
  %s3 = inlined_call_operand.vmem [shape: f32[1,128], index: 3, kind: input, shape index: {}]
  %s4 = inlined_call_operand.vmem [shape: f32[128,128], index: 4, kind: input, shape index: {}]
  %s5 = inlined_call_operand.vmem [shape: f32[1,128], index: 5, kind: input, shape index: {}]
  %s6 = inlined_call_operand.vmem [shape: f32[192,128], index: 6, kind: input, shape index: {}, may-alias: {6,12}]
  %s7 = inlined_call_operand.vmem [shape: f32[1,128], index: 7, kind: input, shape index: {}, may-alias: {7,13}]
  %s8 = inlined_call_operand.vmem [shape: f32[128,128], index: 8, kind: input, shape index: {}, may-alias: {8,14}]
  %s9 = inlined_call_operand.vmem [shape: f32[1,128], index: 9, kind: input, shape index: {}, may-alias: {9,15}]
  %s10 = inlined_call_operand.vmem [shape: f32[8,128], index: 10, kind: output, shape index: {0}]
  %s11 = inlined_call_operand.vmem [shape: f32[8,128], index: 11, kind: output, shape index: {1}]
  %s12 = inlined_call_operand.vmem [shape: f32[192,128], index: 12, kind: output, shape index: {2}, may-alias: {6,12}]
  %s13 = inlined_call_operand.vmem [shape: f32[1,128], index: 13, kind: output, shape index: {3}, may-alias: {7,13}]
  %s14 = inlined_call_operand.vmem [shape: f32[128,128], index: 14, kind: output, shape index: {4}, may-alias: {8,14}]
  %s15 = inlined_call_operand.vmem [shape: f32[1,128], index: 15, kind: output, shape index: {5}, may-alias: {9,15}]
  %16 = xla_tuple %s10, %s11, %s12, %s13, %s14, %s15
  %s17 = sld [smem:[#allocation0]]
  $region90: #{moco_forward.2} parent=0
    _
  %s19 = ssub.s32 1, %s17
  %s20 = scalar_select 0, %s19, %s17
  // Predicated region
  $region2: #{moco_forward.2} parent=0 // pred_check
    _
  $region3: #{moco_forward.2} parent=0 // pred_check_branch
    %22 = sbr.rel (0) target = $region5
  $region4: #{moco_forward.2} parent=0 // pred_region
    _
  $region5: #{moco_forward.2} parent=0 // pred_fallthru
    _
  // Predicated region
  $region6: #{moco_forward.2} parent=0 // pred_check
    _
  $region7: #{moco_forward.2} parent=0 // pred_check_branch
    %24 = sbr.rel (0) target = $region9
  $region8: #{moco_forward.2} parent=0 // pred_region
    _
  $region9: #{moco_forward.2} parent=0 // pred_fallthru
    _
  // Predicated region
  $region10: #{moco_forward.2} parent=0 // pred_check
    _
  $region11: #{moco_forward.2} parent=0 // pred_check_branch
    %26 = sbr.rel (0) target = $region13
  $region12: #{moco_forward.2} parent=0 // pred_region
    _
  $region13: #{moco_forward.2} parent=0 // pred_fallthru
    _
  // Predicated region
  $region14: #{moco_forward.2} parent=0 // pred_check
    _
  $region15: #{moco_forward.2} parent=0 // pred_check_branch
    %28 = sbr.rel (0) target = $region17
  $region16: #{moco_forward.2} parent=0 // pred_region
    _
  $region17: #{moco_forward.2} parent=0 // pred_fallthru
    _
  // Predicated region
  $region18: #{moco_forward.2} parent=0 // pred_check
    _
  $region19: #{moco_forward.2} parent=0 // pred_check_branch
    %30 = sbr.rel (0) target = $region21
  $region20: #{moco_forward.2} parent=0 // pred_region
    _
  $region21: #{moco_forward.2} parent=0 // pred_fallthru
    _
  // Predicated region
  $region22: #{moco_forward.2} parent=0 // pred_check
    _
  $region23: #{moco_forward.2} parent=0 // pred_check_branch
    %32 = sbr.rel (0) target = $region25
  $region24: #{moco_forward.2} parent=0 // pred_region
    _
  $region25: #{moco_forward.2} parent=0 // pred_fallthru
    _
  // Predicated region
  $region26: #{moco_forward.2} parent=0 // pred_check
    _
  $region27: #{moco_forward.2} parent=0 // pred_check_branch
    %34 = sbr.rel (0) target = $region29
  $region28: #{moco_forward.2} parent=0 // pred_region
    _
  $region29: #{moco_forward.2} parent=0 // pred_fallthru
    _
  // Predicated region
  $region30: #{moco_forward.2} parent=0 // pred_check
    _
  $region31: #{moco_forward.2} parent=0 // pred_check_branch
    %36 = sbr.rel (0) target = $region33
  $region32: #{moco_forward.2} parent=0 // pred_region
    _
  $region33: #{moco_forward.2} parent=0 // pred_fallthru
    _
  // Predicated region
  $region34: #{moco_forward.2} parent=0 // pred_check
    _
  $region35: #{moco_forward.2} parent=0 // pred_check_branch
    %38 = sbr.rel (0) target = $region37
  $region36: #{moco_forward.2} parent=0 // pred_region
    _
  $region37: #{moco_forward.2} parent=0 // pred_fallthru
    _
  // Predicated region
  $region38: #{moco_forward.2} parent=0 // pred_check
    _
  $region39: #{moco_forward.2} parent=0 // pred_check_branch
    %40 = sbr.rel (0) target = $region41
  $region40: #{moco_forward.2} parent=0 // pred_region
    _
  $region41: #{moco_forward.2} parent=0 // pred_fallthru
    _
  %v42 = vld [vmem:[%s2] sm:$0xff]
  %v43 = vld [vmem:[%s2 + $0x8] sm:$0xff]
  %v44 = vld [vmem:[%s2 + $0x10] sm:$0xff]
  %v45 = vld [vmem:[%s2 + $0x18] sm:$0xff]
  %v46 = vld [vmem:[%s2 + $0x20] sm:$0xff]
  %v47 = vld [vmem:[%s2 + $0x28] sm:$0xff]
  %v48 = vld [vmem:[%s2 + $0x30] sm:$0xff]
  %v49 = vld [vmem:[%s2 + $0x38] sm:$0xff]
  %v50 = vld [vmem:[%s2 + $0x40] sm:$0xff]
  %v51 = vld [vmem:[%s2 + $0x48] sm:$0xff]
  %v52 = vld [vmem:[%s2 + $0x50] sm:$0xff]
  %v53 = vld [vmem:[%s2 + $0x58] sm:$0xff]
  %v54 = vld [vmem:[%s2 + $0x60] sm:$0xff]
  %v55 = vld [vmem:[%s2 + $0x68] sm:$0xff]
  %v56 = vld [vmem:[%s2 + $0x70] sm:$0xff]
  %v57 = vld [vmem:[%s2 + $0x78] sm:$0xff]
  %v58 = vld [vmem:[%s2 + $0x80] sm:$0xff]
  %v59 = vld [vmem:[%s2 + $0x88] sm:$0xff]
  %v60 = vld [vmem:[%s2 + $0x90] sm:$0xff]
  %v61 = vld [vmem:[%s2 + $0x98] sm:$0xff]
  %v62 = vld [vmem:[%s2 + $0xa0] sm:$0xff]
  %v63 = vld [vmem:[%s2 + $0xa8] sm:$0xff]
  %v64 = vld [vmem:[%s2 + $0xb0] sm:$0xff]
  %v65 = vld [vmem:[%s2 + $0xb8] sm:$0xff]
  %v66 = vld [vmem:[%s3] sm:$0x1]
  %v67 = vld [vmem:[%s4] sm:$0xff]
  %v68 = vld [vmem:[%s4 + $0x8] sm:$0xff]
  %v69 = vld [vmem:[%s4 + $0x10] sm:$0xff]
  %v70 = vld [vmem:[%s4 + $0x18] sm:$0xff]
  %v71 = vld [vmem:[%s4 + $0x20] sm:$0xff]
  %v72 = vld [vmem:[%s4 + $0x28] sm:$0xff]
  %v73 = vld [vmem:[%s4 + $0x30] sm:$0xff]
  %v74 = vld [vmem:[%s4 + $0x38] sm:$0xff]
  %v75 = vld [vmem:[%s4 + $0x40] sm:$0xff]
  %v76 = vld [vmem:[%s4 + $0x48] sm:$0xff]
  %v77 = vld [vmem:[%s4 + $0x50] sm:$0xff]
  %v78 = vld [vmem:[%s4 + $0x58] sm:$0xff]
  %v79 = vld [vmem:[%s4 + $0x60] sm:$0xff]
  %v80 = vld [vmem:[%s4 + $0x68] sm:$0xff]
  %v81 = vld [vmem:[%s4 + $0x70] sm:$0xff]
  %v82 = vld [vmem:[%s4 + $0x78] sm:$0xff]
  %v83 = vld [vmem:[%s5] sm:$0x1]
  %v84 = vld [vmem:[%s6] sm:$0xff]
  %v85 = vld [vmem:[%s6 + $0x8] sm:$0xff]
  %v86 = vld [vmem:[%s6 + $0x10] sm:$0xff]
  %v87 = vld [vmem:[%s6 + $0x18] sm:$0xff]
  %v88 = vld [vmem:[%s6 + $0x20] sm:$0xff]
  %v89 = vld [vmem:[%s6 + $0x28] sm:$0xff]
  %v90 = vld [vmem:[%s6 + $0x30] sm:$0xff]
  %v91 = vld [vmem:[%s6 + $0x38] sm:$0xff]
  %v92 = vld [vmem:[%s6 + $0x40] sm:$0xff]
  %v93 = vld [vmem:[%s6 + $0x48] sm:$0xff]
  %v94 = vld [vmem:[%s6 + $0x50] sm:$0xff]
  %v95 = vld [vmem:[%s6 + $0x58] sm:$0xff]
  %v96 = vld [vmem:[%s6 + $0x60] sm:$0xff]
  %v97 = vld [vmem:[%s6 + $0x68] sm:$0xff]
  %v98 = vld [vmem:[%s6 + $0x70] sm:$0xff]
  %v99 = vld [vmem:[%s6 + $0x78] sm:$0xff]
  %v100 = vld [vmem:[%s6 + $0x80] sm:$0xff]
  %v101 = vld [vmem:[%s6 + $0x88] sm:$0xff]
  %v102 = vld [vmem:[%s6 + $0x90] sm:$0xff]
  %v103 = vld [vmem:[%s6 + $0x98] sm:$0xff]
  %v104 = vld [vmem:[%s6 + $0xa0] sm:$0xff]
  %v105 = vld [vmem:[%s6 + $0xa8] sm:$0xff]
  %v106 = vld [vmem:[%s6 + $0xb0] sm:$0xff]
  %v107 = vld [vmem:[%s6 + $0xb8] sm:$0xff]
  %v108 = vmul.f32 %v84, 0.999
  %v109 = vmul.f32 %v85, 0.999
  %v110 = vmul.f32 %v86, 0.999
  %v111 = vmul.f32 %v87, 0.999
  %v112 = vmul.f32 %v88, 0.999
  %v113 = vmul.f32 %v89, 0.999
  %v114 = vmul.f32 %v90, 0.999
  %v115 = vmul.f32 %v91, 0.999
  %v116 = vmul.f32 %v92, 0.999
  %v117 = vmul.f32 %v93, 0.999
  %v118 = vmul.f32 %v94, 0.999
  %v119 = vmul.f32 %v95, 0.999
  %v120 = vmul.f32 %v96, 0.999
  %v121 = vmul.f32 %v97, 0.999
  %v122 = vmul.f32 %v98, 0.999
  %v123 = vmul.f32 %v99, 0.999
  %v124 = vmul.f32 %v100, 0.999
  %v125 = vmul.f32 %v101, 0.999
  %v126 = vmul.f32 %v102, 0.999
  %v127 = vmul.f32 %v103, 0.999
  %v128 = vmul.f32 %v104, 0.999
  %v129 = vmul.f32 %v105, 0.999
  %v130 = vmul.f32 %v106, 0.999
  %v131 = vmul.f32 %v107, 0.999
  %v132 = vmul.f32 %v42, 0.001
  %v133 = vmul.f32 %v43, 0.001
  %v134 = vmul.f32 %v44, 0.001
  %v135 = vmul.f32 %v45, 0.001
  %v136 = vmul.f32 %v46, 0.001
  %v137 = vmul.f32 %v47, 0.001
  %v138 = vmul.f32 %v48, 0.001
  %v139 = vmul.f32 %v49, 0.001
  %v140 = vmul.f32 %v50, 0.001
  %v141 = vmul.f32 %v51, 0.001
  %v142 = vmul.f32 %v52, 0.001
  %v143 = vmul.f32 %v53, 0.001
  %v144 = vmul.f32 %v54, 0.001
  %v145 = vmul.f32 %v55, 0.001
  %v146 = vmul.f32 %v56, 0.001
  %v147 = vmul.f32 %v57, 0.001
  %v148 = vmul.f32 %v58, 0.001
  %v149 = vmul.f32 %v59, 0.001
  %v150 = vmul.f32 %v60, 0.001
  %v151 = vmul.f32 %v61, 0.001
  %v152 = vmul.f32 %v62, 0.001
  %v153 = vmul.f32 %v63, 0.001
  %v154 = vmul.f32 %v64, 0.001
  %v155 = vmul.f32 %v65, 0.001
  %v156 = vadd.f32 %v108, %v132
  %v157 = vadd.f32 %v109, %v133
  %v158 = vadd.f32 %v110, %v134
  %v159 = vadd.f32 %v111, %v135
  %v160 = vadd.f32 %v112, %v136
  %v161 = vadd.f32 %v113, %v137
  %v162 = vadd.f32 %v114, %v138
  %v163 = vadd.f32 %v115, %v139
  %v164 = vadd.f32 %v116, %v140
  %v165 = vadd.f32 %v117, %v141
  %v166 = vadd.f32 %v118, %v142
  %v167 = vadd.f32 %v119, %v143
  %v168 = vadd.f32 %v120, %v144
  %v169 = vadd.f32 %v121, %v145
  %v170 = vadd.f32 %v122, %v146
  %v171 = vadd.f32 %v123, %v147
  %v172 = vadd.f32 %v124, %v148
  %v173 = vadd.f32 %v125, %v149
  %v174 = vadd.f32 %v126, %v150
  %v175 = vadd.f32 %v127, %v151
  %v176 = vadd.f32 %v128, %v152
  %v177 = vadd.f32 %v129, %v153
  %v178 = vadd.f32 %v130, %v154
  %v179 = vadd.f32 %v131, %v155
  %v180 = vld [vmem:[%s7] sm:$0x1]
  %v181 = vmul.f32 %v180, 0.999
  %v182 = vmul.f32 %v66, 0.001
  %v183 = vadd.f32 %v181, %v182
  %v184 = vld [vmem:[%s8] sm:$0xff]
  %v185 = vld [vmem:[%s8 + $0x8] sm:$0xff]
  %v186 = vld [vmem:[%s8 + $0x10] sm:$0xff]
  %v187 = vld [vmem:[%s8 + $0x18] sm:$0xff]
  %v188 = vld [vmem:[%s8 + $0x20] sm:$0xff]
  %v189 = vld [vmem:[%s8 + $0x28] sm:$0xff]
  %v190 = vld [vmem:[%s8 + $0x30] sm:$0xff]
  %v191 = vld [vmem:[%s8 + $0x38] sm:$0xff]
  %v192 = vld [vmem:[%s8 + $0x40] sm:$0xff]
  %v193 = vld [vmem:[%s8 + $0x48] sm:$0xff]
  %v194 = vld [vmem:[%s8 + $0x50] sm:$0xff]
  %v195 = vld [vmem:[%s8 + $0x58] sm:$0xff]
  %v196 = vld [vmem:[%s8 + $0x60] sm:$0xff]
  %v197 = vld [vmem:[%s8 + $0x68] sm:$0xff]
  %v198 = vld [vmem:[%s8 + $0x70] sm:$0xff]
  %v199 = vld [vmem:[%s8 + $0x78] sm:$0xff]
  %v200 = vmul.f32 %v184, 0.999
  %v201 = vmul.f32 %v185, 0.999
  %v202 = vmul.f32 %v186, 0.999
  %v203 = vmul.f32 %v187, 0.999
  %v204 = vmul.f32 %v188, 0.999
  %v205 = vmul.f32 %v189, 0.999
  %v206 = vmul.f32 %v190, 0.999
  %v207 = vmul.f32 %v191, 0.999
  %v208 = vmul.f32 %v192, 0.999
  %v209 = vmul.f32 %v193, 0.999
  %v210 = vmul.f32 %v194, 0.999
  %v211 = vmul.f32 %v195, 0.999
  %v212 = vmul.f32 %v196, 0.999
  %v213 = vmul.f32 %v197, 0.999
  %v214 = vmul.f32 %v198, 0.999
  %v215 = vmul.f32 %v199, 0.999
  %v216 = vmul.f32 %v67, 0.001
  %v217 = vmul.f32 %v68, 0.001
  %v218 = vmul.f32 %v69, 0.001
  %v219 = vmul.f32 %v70, 0.001
  %v220 = vmul.f32 %v71, 0.001
  %v221 = vmul.f32 %v72, 0.001
  %v222 = vmul.f32 %v73, 0.001
  %v223 = vmul.f32 %v74, 0.001
  %v224 = vmul.f32 %v75, 0.001
  %v225 = vmul.f32 %v76, 0.001
  %v226 = vmul.f32 %v77, 0.001
  %v227 = vmul.f32 %v78, 0.001
  %v228 = vmul.f32 %v79, 0.001
  %v229 = vmul.f32 %v80, 0.001
  %v230 = vmul.f32 %v81, 0.001
  %v231 = vmul.f32 %v82, 0.001
  %v232 = vadd.f32 %v200, %v216
  %v233 = vadd.f32 %v201, %v217
  %v234 = vadd.f32 %v202, %v218
  %v235 = vadd.f32 %v203, %v219
  %v236 = vadd.f32 %v204, %v220
  %v237 = vadd.f32 %v205, %v221
  %v238 = vadd.f32 %v206, %v222
  %v239 = vadd.f32 %v207, %v223
  %v240 = vadd.f32 %v208, %v224
  %v241 = vadd.f32 %v209, %v225
  %v242 = vadd.f32 %v210, %v226
  %v243 = vadd.f32 %v211, %v227
  %v244 = vadd.f32 %v212, %v228
  %v245 = vadd.f32 %v213, %v229
  %v246 = vadd.f32 %v214, %v230
  %v247 = vadd.f32 %v215, %v231
  %v248 = vld [vmem:[%s9] sm:$0x1]
  %v249 = vmul.f32 %v248, 0.999
  %v250 = vmul.f32 %v83, 0.001
  %v251 = vadd.f32 %v249, %v250
  %252 = vst [vmem:[%s12] sm:$0xff] %v156
  %253 = vst [vmem:[%s12 + $0x8] sm:$0xff] %v157
  %254 = vst [vmem:[%s12 + $0x10] sm:$0xff] %v158
  %255 = vst [vmem:[%s12 + $0x18] sm:$0xff] %v159
  %256 = vst [vmem:[%s12 + $0x20] sm:$0xff] %v160
  %257 = vst [vmem:[%s12 + $0x28] sm:$0xff] %v161
  %258 = vst [vmem:[%s12 + $0x30] sm:$0xff] %v162
  %259 = vst [vmem:[%s12 + $0x38] sm:$0xff] %v163
  %260 = vst [vmem:[%s12 + $0x40] sm:$0xff] %v164
  %261 = vst [vmem:[%s12 + $0x48] sm:$0xff] %v165
  %262 = vst [vmem:[%s12 + $0x50] sm:$0xff] %v166
  %263 = vst [vmem:[%s12 + $0x58] sm:$0xff] %v167
  %264 = vst [vmem:[%s12 + $0x60] sm:$0xff] %v168
  %265 = vst [vmem:[%s12 + $0x68] sm:$0xff] %v169
  %266 = vst [vmem:[%s12 + $0x70] sm:$0xff] %v170
  %267 = vst [vmem:[%s12 + $0x78] sm:$0xff] %v171
  %268 = vst [vmem:[%s12 + $0x80] sm:$0xff] %v172
  %269 = vst [vmem:[%s12 + $0x88] sm:$0xff] %v173
  %270 = vst [vmem:[%s12 + $0x90] sm:$0xff] %v174
  %271 = vst [vmem:[%s12 + $0x98] sm:$0xff] %v175
  %272 = vst [vmem:[%s12 + $0xa0] sm:$0xff] %v176
  %273 = vst [vmem:[%s12 + $0xa8] sm:$0xff] %v177
  %274 = vst [vmem:[%s12 + $0xb0] sm:$0xff] %v178
  %275 = vst [vmem:[%s12 + $0xb8] sm:$0xff] %v179
  %276 = vst [vmem:[%s13] sm:$0x1] %v183
  %277 = vst [vmem:[%s14] sm:$0xff] %v232
  %278 = vst [vmem:[%s14 + $0x8] sm:$0xff] %v233
  %279 = vst [vmem:[%s14 + $0x10] sm:$0xff] %v234
  %280 = vst [vmem:[%s14 + $0x18] sm:$0xff] %v235
  %281 = vst [vmem:[%s14 + $0x20] sm:$0xff] %v236
  %282 = vst [vmem:[%s14 + $0x28] sm:$0xff] %v237
  %283 = vst [vmem:[%s14 + $0x30] sm:$0xff] %v238
  %284 = vst [vmem:[%s14 + $0x38] sm:$0xff] %v239
  %285 = vst [vmem:[%s14 + $0x40] sm:$0xff] %v240
  %286 = vst [vmem:[%s14 + $0x48] sm:$0xff] %v241
  %287 = vst [vmem:[%s14 + $0x50] sm:$0xff] %v242
  %288 = vst [vmem:[%s14 + $0x58] sm:$0xff] %v243
  %289 = vst [vmem:[%s14 + $0x60] sm:$0xff] %v244
  %290 = vst [vmem:[%s14 + $0x68] sm:$0xff] %v245
  %291 = vst [vmem:[%s14 + $0x70] sm:$0xff] %v246
  %292 = vst [vmem:[%s14 + $0x78] sm:$0xff] %v247
  %293 = vst [vmem:[%s15] sm:$0x1] %v251
  %v294 = vld [vmem:[%s0] sm:$0xff]
  %v295 = vld [vmem:[%s0 + $0x8] sm:$0xff]
  %v296 = vpack.c.bf16 %v294, %v294
  %v297 = vpack.c.bf16 %v295, %v295
  %v298 = vpack.c.bf16 %v43, %v42
  %v299 = vpack.c.bf16 %v45, %v44
  %v300 = vpack.c.bf16 %v47, %v46
  %v301 = vpack.c.bf16 %v49, %v48
  %v302 = vpack.c.bf16 %v51, %v50
  %v303 = vpack.c.bf16 %v53, %v52
  %v304 = vpack.c.bf16 %v55, %v54
  %v305 = vpack.c.bf16 %v57, %v56
  %v306 = vpack.c.bf16 %v59, %v58
  %v307 = vpack.c.bf16 %v61, %v60
  %v308 = vpack.c.bf16 %v63, %v62
  %v309 = vpack.c.bf16 %v65, %v64
  %v311 = vlaneseq
  %v312 = vshrl.u32 %v311, 7
  %v313 = vsub.s32 0, %v312
  %v314 = vrot.slane %v66, %v313
  %vm316 = vcmask 523264
  %v318 = vsel %vm316, %v297, 0
  %320 = vmatprep.subr.bf16.mxu0 0
  %321 = vmatpush1.bf16.msra.mxu0 %v298
  %322 = vmatprep.subr.bf16.mxu0 0
  %323 = vmatpush1.bf16.msra.mxu0 %v299
  %324 = vmatprep.subr.bf16.mxu0 0
  %325 = vmatpush1.bf16.msra.mxu0 %v300
  %326 = vmatprep.subr.bf16.mxu0 0
  %327 = vmatpush1.bf16.msra.mxu0 %v301
  %328 = vmatprep.subr.bf16.mxu0 0
  %329 = vmatpush1.bf16.msra.mxu0 %v302
  %330 = vmatprep.subr.bf16.mxu0 0
  %331 = vmatpush1.bf16.msra.mxu0 %v303
  %332 = vmatprep.subr.bf16.mxu0 0
  %333 = vmatpush1.bf16.msra.mxu0 %v304
  %334 = vmatprep.subr.bf16.mxu0 0
  %335 = vmatpush1.bf16.msra.mxu0 %v305
  %336 = vmatprep.subr.bf16.mxu0 0
  %337 = vmatpush1.bf16.msra.mxu0 %v306
  %338 = vmatprep.subr.bf16.mxu0 0
  %339 = vmatpush1.bf16.msra.mxu0 %v307
  %340 = vmatprep.subr.bf16.mxu0 0
  %341 = vmatpush1.bf16.msra.mxu0 %v308
  %342 = vmatprep.subr.bf16.mxu0 0
  %343 = vmatpush1.bf16.msra.mxu0 %v309
  %344 = vmatprep.subr.bf16.mxu0 0
  %345 = vmatpush1.bf16.msra.mxu0 0
  %346 = vmatprep.subr.bf16.mxu0 0
  %347 = vmatpush1.bf16.msra.mxu0 0
  %348 = vmatprep.subr.bf16.mxu0 0
  %349 = vmatpush1.bf16.msra.mxu0 0
  %350 = vmatprep.subr.bf16.mxu0 0
  %351 = vmatpush1.bf16.msra.mxu0 0
  %352 = vmatprep.mubr.bf16.mxu0 %v318
  %353 = vmatmul.mubr.bf16.gmra.mrb[0].mxu0 %v296
  %v354 = vpop.f32.mrb[0].mxu0
  %v355 = vadd.f32 %v314, %v354
  %v356 = vpop.f32.mrb[0].mxu0
  %v357 = vpop.f32.mrb[0].mxu0
  %v358 = vpop.f32.mrb[0].mxu0
  %359 = vdwg.mxu0
  %v360 = vmax.f32 %v355, 0.0
  %v361 = vpack.c.bf16 %v360, %v360
  %v362 = vpack.c.bf16 %v68, %v67
  %v363 = vpack.c.bf16 %v70, %v69
  %v364 = vpack.c.bf16 %v72, %v71
  %v365 = vpack.c.bf16 %v74, %v73
  %v366 = vpack.c.bf16 %v76, %v75
  %v367 = vpack.c.bf16 %v78, %v77
  %v368 = vpack.c.bf16 %v80, %v79
  %v369 = vpack.c.bf16 %v82, %v81
  %v371 = vlaneseq
  %v372 = vshrl.u32 %v371, 7
  %v373 = vsub.s32 0, %v372
  %v374 = vrot.slane %v83, %v373
  %376 = vmatprep.subr.bf16.mxu0 0
  %377 = vmatpush1.bf16.msra.mxu0 %v362
  %378 = vmatprep.subr.bf16.mxu0 0
  %379 = vmatpush1.bf16.msra.mxu0 %v363
  %380 = vmatprep.subr.bf16.mxu0 0
  %381 = vmatpush1.bf16.msra.mxu0 %v364
  %382 = vmatprep.subr.bf16.mxu0 0
  %383 = vmatpush1.bf16.msra.mxu0 %v365
  %384 = vmatprep.subr.bf16.mxu0 0
  %385 = vmatpush1.bf16.msra.mxu0 %v366
  %386 = vmatprep.subr.bf16.mxu0 0
  %387 = vmatpush1.bf16.msra.mxu0 %v367
  %388 = vmatprep.subr.bf16.mxu0 0
  %389 = vmatpush1.bf16.msra.mxu0 %v368
  %390 = vmatprep.subr.bf16.mxu0 0
  %391 = vmatpush1.bf16.msra.mxu0 %v369
  %392 = vmatprep.subr.bf16.mxu0 0
  %393 = vmatpush1.bf16.msra.mxu0 0
  %394 = vmatprep.subr.bf16.mxu0 0
  %395 = vmatpush1.bf16.msra.mxu0 0
  %396 = vmatprep.subr.bf16.mxu0 0
  %397 = vmatpush1.bf16.msra.mxu0 0
  %398 = vmatprep.subr.bf16.mxu0 0
  %399 = vmatpush1.bf16.msra.mxu0 0
  %400 = vmatprep.subr.bf16.mxu0 0
  %401 = vmatpush1.bf16.msra.mxu0 0
  %402 = vmatprep.subr.bf16.mxu0 0
  %403 = vmatpush1.bf16.msra.mxu0 0
  %404 = vmatprep.subr.bf16.mxu0 0
  %405 = vmatpush1.bf16.msra.mxu0 0
  %406 = vmatprep.subr.bf16.mxu0 0
  %407 = vmatpush1.bf16.msra.mxu0 0
  %408 = vmatprep.mubr.bf16.mxu0 0
  %409 = vmatmul.mubr.bf16.gmra.mrb[0].mxu0 %v361
  %v410 = vpop.f32.mrb[0].mxu0
  %v411 = vadd.f32 %v374, %v410
  %v412 = vpop.f32.mrb[0].mxu0
  %v413 = vpop.f32.mrb[0].mxu0
  %v414 = vpop.f32.mrb[0].mxu0
  %415 = vdwg.mxu0
  %v416 = vmul.f32 %v411, %v411
  %417 = vadd.xlane.f32.xlu0 %v416
  %v418 = vpop.xlane.xlu0 %417
  %v419 = vmax.f32 %v418, 1e-24
  %v420 = vrsqrt.pop %v419
  %v421 = vmul.f32 %v411, %v420
  %422 = vst [vmem:[%s10] sm:$0xff] %v421
  %v423 = vld [vmem:[%s1] sm:$0xff]
  %v424 = vld [vmem:[%s1 + $0x8] sm:$0xff]
  %v425 = vpack.c.bf16 %v423, %v423
  %v426 = vpack.c.bf16 %v424, %v424
  %v427 = vpack.c.bf16 %v157, %v156
  %v428 = vpack.c.bf16 %v159, %v158
  %v429 = vpack.c.bf16 %v161, %v160
  %v430 = vpack.c.bf16 %v163, %v162
  %v431 = vpack.c.bf16 %v165, %v164
  %v432 = vpack.c.bf16 %v167, %v166
  %v433 = vpack.c.bf16 %v169, %v168
  %v434 = vpack.c.bf16 %v171, %v170
  %v435 = vpack.c.bf16 %v173, %v172
  %v436 = vpack.c.bf16 %v175, %v174
  %v437 = vpack.c.bf16 %v177, %v176
  %v438 = vpack.c.bf16 %v179, %v178
  %v440 = vlaneseq
  %v441 = vshrl.u32 %v440, 7
  %v442 = vsub.s32 0, %v441
  %v443 = vrot.slane %v183, %v442
  %v446 = vsel %vm316, %v426, 0
  %448 = vmatprep.subr.bf16.mxu0 0
  %449 = vmatpush1.bf16.msra.mxu0 %v427
  %450 = vmatprep.subr.bf16.mxu0 0
  %451 = vmatpush1.bf16.msra.mxu0 %v428
  %452 = vmatprep.subr.bf16.mxu0 0
  %453 = vmatpush1.bf16.msra.mxu0 %v429
  %454 = vmatprep.subr.bf16.mxu0 0
  %455 = vmatpush1.bf16.msra.mxu0 %v430
  %456 = vmatprep.subr.bf16.mxu0 0
  %457 = vmatpush1.bf16.msra.mxu0 %v431
  %458 = vmatprep.subr.bf16.mxu0 0
  %459 = vmatpush1.bf16.msra.mxu0 %v432
  %460 = vmatprep.subr.bf16.mxu0 0
  %461 = vmatpush1.bf16.msra.mxu0 %v433
  %462 = vmatprep.subr.bf16.mxu0 0
  %463 = vmatpush1.bf16.msra.mxu0 %v434
  %464 = vmatprep.subr.bf16.mxu0 0
  %465 = vmatpush1.bf16.msra.mxu0 %v435
  %466 = vmatprep.subr.bf16.mxu0 0
  %467 = vmatpush1.bf16.msra.mxu0 %v436
  %468 = vmatprep.subr.bf16.mxu0 0
  %469 = vmatpush1.bf16.msra.mxu0 %v437
  %470 = vmatprep.subr.bf16.mxu0 0
  %471 = vmatpush1.bf16.msra.mxu0 %v438
  %472 = vmatprep.subr.bf16.mxu0 0
  %473 = vmatpush1.bf16.msra.mxu0 0
  %474 = vmatprep.subr.bf16.mxu0 0
  %475 = vmatpush1.bf16.msra.mxu0 0
  %476 = vmatprep.subr.bf16.mxu0 0
  %477 = vmatpush1.bf16.msra.mxu0 0
  %478 = vmatprep.subr.bf16.mxu0 0
  %479 = vmatpush1.bf16.msra.mxu0 0
  %480 = vmatprep.mubr.bf16.mxu0 %v446
  %481 = vmatmul.mubr.bf16.gmra.mrb[0].mxu0 %v425
  %v482 = vpop.f32.mrb[0].mxu0
  %v483 = vadd.f32 %v443, %v482
  %v484 = vpop.f32.mrb[0].mxu0
  %v485 = vpop.f32.mrb[0].mxu0
  %v486 = vpop.f32.mrb[0].mxu0
  %487 = vdwg.mxu0
  %v488 = vmax.f32 %v483, 0.0
  %v489 = vpack.c.bf16 %v488, %v488
  %v490 = vpack.c.bf16 %v233, %v232
  %v491 = vpack.c.bf16 %v235, %v234
  %v492 = vpack.c.bf16 %v237, %v236
  %v493 = vpack.c.bf16 %v239, %v238
  %v494 = vpack.c.bf16 %v241, %v240
  %v495 = vpack.c.bf16 %v243, %v242
  %v496 = vpack.c.bf16 %v245, %v244
  %v497 = vpack.c.bf16 %v247, %v246
  %v499 = vlaneseq
  %v500 = vshrl.u32 %v499, 7
  %v501 = vsub.s32 0, %v500
  %v502 = vrot.slane %v251, %v501
  %504 = vmatprep.subr.bf16.mxu0 0
  %505 = vmatpush1.bf16.msra.mxu0 %v490
  %506 = vmatprep.subr.bf16.mxu0 0
  %507 = vmatpush1.bf16.msra.mxu0 %v491
  %508 = vmatprep.subr.bf16.mxu0 0
  %509 = vmatpush1.bf16.msra.mxu0 %v492
  %510 = vmatprep.subr.bf16.mxu0 0
  %511 = vmatpush1.bf16.msra.mxu0 %v493
  %512 = vmatprep.subr.bf16.mxu0 0
  %513 = vmatpush1.bf16.msra.mxu0 %v494
  %514 = vmatprep.subr.bf16.mxu0 0
  %515 = vmatpush1.bf16.msra.mxu0 %v495
  %516 = vmatprep.subr.bf16.mxu0 0
  %517 = vmatpush1.bf16.msra.mxu0 %v496
  %518 = vmatprep.subr.bf16.mxu0 0
  %519 = vmatpush1.bf16.msra.mxu0 %v497
  %520 = vmatprep.subr.bf16.mxu0 0
  %521 = vmatpush1.bf16.msra.mxu0 0
  %522 = vmatprep.subr.bf16.mxu0 0
  %523 = vmatpush1.bf16.msra.mxu0 0
  %524 = vmatprep.subr.bf16.mxu0 0
  %525 = vmatpush1.bf16.msra.mxu0 0
  %526 = vmatprep.subr.bf16.mxu0 0
  %527 = vmatpush1.bf16.msra.mxu0 0
  %528 = vmatprep.subr.bf16.mxu0 0
  %529 = vmatpush1.bf16.msra.mxu0 0
  %530 = vmatprep.subr.bf16.mxu0 0
  %531 = vmatpush1.bf16.msra.mxu0 0
  %532 = vmatprep.subr.bf16.mxu0 0
  %533 = vmatpush1.bf16.msra.mxu0 0
  %534 = vmatprep.subr.bf16.mxu0 0
  %535 = vmatpush1.bf16.msra.mxu0 0
  %536 = vmatprep.mubr.bf16.mxu0 0
  %537 = vmatmul.mubr.bf16.gmra.mrb[0].mxu0 %v489
  %v538 = vpop.f32.mrb[0].mxu0
  %v539 = vadd.f32 %v502, %v538
  %v540 = vpop.f32.mrb[0].mxu0
  %v541 = vpop.f32.mrb[0].mxu0
  %v542 = vpop.f32.mrb[0].mxu0
  %543 = vdwg.mxu0
  %v544 = vmul.f32 %v539, %v539
  %545 = vadd.xlane.f32.xlu0 %v544
  %v546 = vpop.xlane.xlu0 %545
  %v547 = vmax.f32 %v546, 1e-24
  %v548 = vrsqrt.pop %v547
  %v549 = vmul.f32 %v539, %v548
  %550 = vst [vmem:[%s11] sm:$0xff] %v549
  // Predicated region
  $region42: #{moco_forward.2} parent=0 // pred_check
    _
  $region43: #{moco_forward.2} parent=0 // pred_check_branch
    %552 = sbr.rel (0) target = $region45
  $region44: #{moco_forward.2} parent=0 // pred_region
    _
  $region45: #{moco_forward.2} parent=0 // pred_fallthru
    _
  // Predicated region
  $region46: #{moco_forward.2} parent=0 // pred_check
    _
  $region47: #{moco_forward.2} parent=0 // pred_check_branch
    %554 = sbr.rel (0) target = $region49
  $region48: #{moco_forward.2} parent=0 // pred_region
    _
  $region49: #{moco_forward.2} parent=0 // pred_fallthru
    _
  // Predicated region
  $region50: #{moco_forward.2} parent=0 // pred_check
    _
  $region51: #{moco_forward.2} parent=0 // pred_check_branch
    %556 = sbr.rel (0) target = $region53
  $region52: #{moco_forward.2} parent=0 // pred_region
    _
  $region53: #{moco_forward.2} parent=0 // pred_fallthru
    _
  // Predicated region
  $region54: #{moco_forward.2} parent=0 // pred_check
    _
  $region55: #{moco_forward.2} parent=0 // pred_check_branch
    %558 = sbr.rel (0) target = $region57
  $region56: #{moco_forward.2} parent=0 // pred_region
    _
  $region57: #{moco_forward.2} parent=0 // pred_fallthru
    _
  // Predicated region
  $region58: #{moco_forward.2} parent=0 // pred_check
    _
  $region59: #{moco_forward.2} parent=0 // pred_check_branch
    %560 = sbr.rel (0) target = $region61
  $region60: #{moco_forward.2} parent=0 // pred_region
    _
  $region61: #{moco_forward.2} parent=0 // pred_fallthru
    _
  // Predicated region
  $region62: #{moco_forward.2} parent=0 // pred_check
    _
  $region63: #{moco_forward.2} parent=0 // pred_check_branch
    %562 = sbr.rel (0) target = $region65
  $region64: #{moco_forward.2} parent=0 // pred_region
    _
  $region65: #{moco_forward.2} parent=0 // pred_fallthru
    _
  // Predicated region
  $region66: #{moco_forward.2} parent=0 // pred_check
    _
  $region67: #{moco_forward.2} parent=0 // pred_check_branch
    %564 = sbr.rel (0) target = $region69
  $region68: #{moco_forward.2} parent=0 // pred_region
    _
  $region69: #{moco_forward.2} parent=0 // pred_fallthru
    _
  // Predicated region
  $region70: #{moco_forward.2} parent=0 // pred_check
    _
  $region71: #{moco_forward.2} parent=0 // pred_check_branch
    %566 = sbr.rel (0) target = $region73
  $region72: #{moco_forward.2} parent=0 // pred_region
    _
  $region73: #{moco_forward.2} parent=0 // pred_fallthru
    _
  // Predicated region
  $region74: #{moco_forward.2} parent=0 // pred_check
    _
  $region75: #{moco_forward.2} parent=0 // pred_check_branch
    %568 = sbr.rel (0) target = $region77
  $region76: #{moco_forward.2} parent=0 // pred_region
    _
  $region77: #{moco_forward.2} parent=0 // pred_fallthru
    _
  // Predicated region
  $region78: #{moco_forward.2} parent=0 // pred_check
    _
  $region79: #{moco_forward.2} parent=0 // pred_check_branch
    %570 = sbr.rel (0) target = $region81
  $region80: #{moco_forward.2} parent=0 // pred_region
    _
  $region81: #{moco_forward.2} parent=0 // pred_fallthru
    _
  // Predicated region
  $region82: #{moco_forward.2} parent=0 // pred_check
    _
  $region83: #{moco_forward.2} parent=0 // pred_check_branch
    %572 = sbr.rel (0) target = $region85
  $region84: #{moco_forward.2} parent=0 // pred_region
    _
  $region85: #{moco_forward.2} parent=0 // pred_fallthru
    _
  // Predicated region
  $region86: #{moco_forward.2} parent=0 // pred_check
    _
  $region87: #{moco_forward.2} parent=0 // pred_check_branch
    %574 = sbr.rel (0) target = $region89
  $region88: #{moco_forward.2} parent=0 // pred_region
    _
  $region89: #{moco_forward.2} parent=0 // pred_fallthru
    _

</llo_original>
